<compile_context>
chip_gen: v7x
topology: tpu7x:2x2x1
jax: 0.10.0
libtpu: 0.0.40
codegen_flags: <defaults>
</compile_context>

<pallas_src>
import numpy as np
import jax
import jax.numpy as jnp
from jax.experimental import pallas as pl
from jax.experimental.pallas import tpu as pltpu

Q_BIT = 4
PACK_NUM = 32 // Q_BIT          # 8 nibbles per int32
GROUP_SIZE = 128
ROWS_PER_GROUP = GROUP_SIZE // PACK_NUM   # 16 packed rows per quant group


def align_up(a, b):
    return (a + b - 1) // b * b


def ceil_div(a, b):
    return (a + b - 1) // b


# ---------------------------------------------------------------------------
# Kernel
# ---------------------------------------------------------------------------
def _awq_matmul_kernel(x_ref, xg_ref, qw_ref, s_ref, nzs_ref, b_ref, o_ref,
                       acc_ref, w_ref):
    """One (M-tile, O-tile) output block, accumulated over the K grid axis.

    x_ref  : (TM, tk)        bf16  activations, natural feature order
    xg_ref : (TM, Gc)        bf16  per-group activation sums (zero-fold corr.)
    qw_ref : (tk//8, TO)     int32 packed 4-bit weights, K-major, group-local
                                   plane layout
    s_ref  : (tk//128, TO)   bf16  per-group scales
    nzs_ref: (Gc, TO)        bf16  -(zero * scale), full group dim
    b_ref  : (1, TO)         f32   bias
    o_ref  : (TM, TO)              output tile
    acc_ref: (TM, TO)        f32   accumulator scratch (resident across K axis)
    w_ref  : (tk//128, 128, TO) bf16 dequantized-weight slab scratch
    """
    ki = pl.program_id(2)
    gt, t_o = s_ref.shape                              # groups in this K tile

    # Zero-point correction doubles as the accumulator init (once per tile):
    #   acc = x_group_sums @ (-zero*scale)   -- tiny contraction-G dot.
    @pl.when(ki == 0)
    def _init():
        acc_ref[...] = jnp.dot(xg_ref[...], nzs_ref[...],
                               preferred_element_type=jnp.float32)

    # Dequantize the packed tile into a lane-dense bf16 (tk, TO) slab.
    # Offline repack guarantees nibble j of row 16g+i == feature 128g + 16j + i,
    # so plane j lands at rows [16j, 16j+16) of every group block and the
    # assembled slab is in natural feature order (matches un-permuted x).
    qw = qw_ref[...]                                   # (16*gt, TO) int32
    sb = s_ref[...][:, None, :]                        # (gt, 1, TO) bf16 (hoisted)
    for j in range(PACK_NUM):                          # static 8-way unroll
        q = ((qw >> (Q_BIT * j)) & 0xF).astype(jnp.float32).astype(jnp.bfloat16)
        w_ref[:, ROWS_PER_GROUP * j:ROWS_PER_GROUP * (j + 1), :] = (
            q.reshape(gt, ROWS_PER_GROUP, t_o) * sb)

    # Single full-depth MXU dot against naturally-ordered activations.
    w = w_ref[...].reshape(gt * GROUP_SIZE, t_o)       # (tk, TO) bf16
    acc_ref[...] += jnp.dot(x_ref[...], w, preferred_element_type=jnp.float32)

    @pl.when(ki == pl.num_programs(2) - 1)
    def _finalize():
        o_ref[...] = (acc_ref[...] + b_ref[...]).astype(o_ref.dtype)


# ---------------------------------------------------------------------------
# One-time weight preparation (offline at weight-load time in deployment)
# ---------------------------------------------------------------------------
def prepare_awq_params(qweight, qzeros, scales, bias=None, *,
                       group_size=GROUP_SIZE, lane_pad=128):
    """Repack AWQLinear buffers into a kernel-friendly, K-major layout.

    Returns (qweight_t, scales_t, nzs_t, bias2d, out_features):
      qweight_t: (K//8, O_pad) int32  nibble j of row 16g+i = feature 128g+16j+i
      scales_t : (G, O_pad)    bf16   per-group scales
      nzs_t    : (G_pad, O_pad) bf16  -(zero * scale), computed in f32, rounded once
      bias2d   : (1, O_pad)    f32
    """
    qw = np.asarray(qweight).astype(np.uint32)        # (O, K/8)
    qz = np.asarray(qzeros).astype(np.uint32)         # (O, ceil(G/8))
    sc = np.asarray(scales).astype(np.float32)        # (O, align_up(G,8))
    o, kp = qw.shape
    k = kp * PACK_NUM
    g = k // group_size

    shifts = Q_BIT * np.arange(PACK_NUM, dtype=np.uint32)
    # Unpack (sequential little-nibble order, matching the spec's from_linear).
    iw = ((qw[:, :, None] >> shifts[None, None, :]) & 0xF).reshape(o, k)
    z = ((qz[:, :, None] >> shifts[None, None, :]) & 0xF).reshape(o, -1)
    z = z[:, :g].astype(np.float32)                    # (O, G)
    s = sc[:, :g]                                      # (O, G) f32
    nzs = -(z * s)                                     # (O, G) f32, rounded to bf16 once

    # Repack: K-major, group-local plane layout.
    iw4 = iw.reshape(o, g, PACK_NUM, ROWS_PER_GROUP).transpose(1, 3, 0, 2)  # [g,i,o,j]
    packed = np.zeros((g, ROWS_PER_GROUP, o), dtype=np.uint32)
    for j in range(PACK_NUM):
        packed |= iw4[..., j] << (Q_BIT * j)
    qweight_t = packed.reshape(k // PACK_NUM, o).view(np.int32)   # (K/8, O)

    s_t = s.T                                          # (G, O)
    nzs_t = nzs.T                                      # (G, O)
    b = np.zeros((o,), np.float32) if bias is None else np.asarray(bias, np.float32)

    o_pad = align_up(o, lane_pad)
    if o_pad != o:                                     # padded cols -> 0
        qweight_t = np.pad(qweight_t, ((0, 0), (0, o_pad - o)))
        s_t = np.pad(s_t, ((0, 0), (0, o_pad - o)))
        nzs_t = np.pad(nzs_t, ((0, 0), (0, o_pad - o)))
        b = np.pad(b, (0, o_pad - o))

    # Pad the correction's group dim to a multiple of 8 (sublane friendly).
    g_pad = align_up(g, 8)
    if g_pad != g:
        nzs_t = np.pad(nzs_t, ((0, g_pad - g), (0, 0)))

    return (jnp.asarray(qweight_t),
            jnp.asarray(s_t, dtype=jnp.bfloat16),
            jnp.asarray(nzs_t, dtype=jnp.bfloat16),
            jnp.asarray(b.reshape(1, o_pad), dtype=jnp.float32),
            o)


# ---------------------------------------------------------------------------
# Tile / VMEM budget selection
# ---------------------------------------------------------------------------
def _select_tiles(m, k, o_pad, out_itemsize, *, tile_m_max, tile_o_max,
                  vmem_budget_bytes):
    g = k // GROUP_SIZE
    tile_o = tile_o_max if o_pad % tile_o_max == 0 else 128
    tile_m = tile_m_max if m >= tile_m_max else align_up(m, 8)
    m_pad = align_up(m, tile_m)
    # v7x has two TensorCores: keep >= 2 parallel (mi, oi) tiles when possible.
    if ((m_pad // tile_m) * (o_pad // tile_o) < 2 and tile_o > 128
            and o_pad % 256 == 0):
        tile_o = 128

    def vmem_use(tk):
        gt = tk // GROUP_SIZE
        dbl = 2 * (tile_m * tk * 2                      # x (bf16)
                   + tile_m * align_up(g, 8) * 2        # x group sums
                   + (tk // PACK_NUM) * tile_o * 4      # packed weights
                   + gt * tile_o * 2                    # scales
                   + align_up(g, 8) * tile_o * 2        # -zero*scale
                   + tile_o * 4                         # bias
                   + tile_m * tile_o * out_itemsize)    # output
        return dbl + tile_m * tile_o * 4 + tk * tile_o * 2   # acc + dequant slab

    # K tile = whole number of groups; keep Gt a multiple of 8 unless it is the
    # full K.  Prefer tk == K so x is DMA'd once and the K axis collapses.
    cands = sorted((d for d in range(1, g + 1)
                    if g % d == 0 and (d % 8 == 0 or d == g)), reverse=True)
    tk = next((GROUP_SIZE * d for d in cands
               if vmem_use(GROUP_SIZE * d) <= vmem_budget_bytes),
              GROUP_SIZE * cands[-1])
    return tile_m, m_pad, tile_o, tk


# ---------------------------------------------------------------------------
# Forward wrapper
# ---------------------------------------------------------------------------
def awq_linear(x, qweight_t, scales_t, nzs_t, bias2d, out_features, *,
               group_size=GROUP_SIZE, tile_m_max=512, tile_o_max=256,
               vmem_budget_bytes=32 * 2**20):
    orig_shape = x.shape
    k = orig_shape[-1]
    kp, o_pad = qweight_t.shape
    assert kp * PACK_NUM == k
    assert k % group_size == 0 and o_pad % 128 == 0
    g = k // group_size
    g_corr = nzs_t.shape[0]                            # padded group dim (>= g)

    out_dtype = x.dtype
    out_itemsize = jnp.dtype(out_dtype).itemsize
    x2 = x.reshape(-1, k)
    m = x2.shape[0]

    tile_m, m_pad, tile_o, tk = _select_tiles(
        m, k, o_pad, out_itemsize, tile_m_max=tile_m_max,
        tile_o_max=tile_o_max, vmem_budget_bytes=vmem_budget_bytes)
    gt = tk // group_size
    nk = k // tk

    # bf16 activations in natural (M, K) layout -- no per-call gather/transpose.
    xb = x2.astype(jnp.bfloat16)
    if m_pad != m:
        xb = jnp.pad(xb, ((0, m_pad - m), (0, 0)))
    # Per-group activation sums for the folded zero-point correction.
    xg = xb.astype(jnp.float32).reshape(m_pad, g, group_size).sum(axis=-1)
    if g_corr != g:
        xg = jnp.pad(xg, ((0, 0), (0, g_corr - g)))
    xg = xg.astype(jnp.bfloat16)

    cost = pl.CostEstimate(
        flops=int(2 * m_pad * k * o_pad + 2 * m_pad * g_corr * o_pad),
        transcendentals=0,
        bytes_accessed=int(k * o_pad // 2 + m_pad * k * 2 + m_pad * g_corr * 2
                           + 2 * g_corr * o_pad * 2
                           + m_pad * o_pad * out_itemsize))

    out = pl.pallas_call(
        _awq_matmul_kernel,
        out_shape=jax.ShapeDtypeStruct((m_pad, o_pad), out_dtype),
        grid_spec=pltpu.PrefetchScalarGridSpec(
            num_scalar_prefetch=0,
            grid=(m_pad // tile_m, o_pad // tile_o, nk),
            in_specs=[
                pl.BlockSpec((tile_m, tk), lambda mi, oi, ki: (mi, ki)),      # x
                pl.BlockSpec((tile_m, g_corr), lambda mi, oi, ki: (mi, 0)),   # x group sums
                pl.BlockSpec((tk // PACK_NUM, tile_o),
                             lambda mi, oi, ki: (ki, oi)),                    # packed w
                pl.BlockSpec((gt, tile_o), lambda mi, oi, ki: (ki, oi)),      # scales
                pl.BlockSpec((g_corr, tile_o), lambda mi, oi, ki: (0, oi)),   # -zero*scale
                pl.BlockSpec((1, tile_o), lambda mi, oi, ki: (0, oi)),        # bias
            ],
            out_specs=pl.BlockSpec((tile_m, tile_o),
                                   lambda mi, oi, ki: (mi, oi)),
            scratch_shapes=[
                pltpu.VMEM((tile_m, tile_o), jnp.float32),              # f32 acc
                pltpu.VMEM((gt, GROUP_SIZE, tile_o), jnp.bfloat16),     # dequant slab
            ]),
        compiler_params=pltpu.CompilerParams(
            dimension_semantics=("parallel", "parallel", "arbitrary"),
            # Budgeted for v7x's 64 MiB physical VMEM; raise on v5e/v6e (128 MiB).
            vmem_limit_bytes=min(int(vmem_budget_bytes * 3 // 2), 96 * 2**20)),
        cost_estimate=cost,
    )(xb, xg, qweight_t, scales_t, nzs_t, bias2d)

    out = out[:m, :out_features]
    return out.reshape(orig_shape[:-1] + (out_features,))


# ---------------------------------------------------------------------------
# Test helpers / demo
# ---------------------------------------------------------------------------
def _pack_nibbles(int_vals_u32, n_cols_out):
    """Pack 4-bit values along axis 1, 8 per int32 (sequential nibble order,
    exactly like the provided AWQLinear.from_linear)."""
    rows, cols = int_vals_u32.shape
    packed = np.zeros((rows, n_cols_out), dtype=np.uint32)
    for i in range(n_cols_out):
        for j in range(PACK_NUM):
            c = i * PACK_NUM + j
            if c >= cols:
                break
            packed[:, i] |= int_vals_u32[:, c] << (j * Q_BIT)
    return packed.view(np.int32)


if __name__ == "__main__":
    in_features = 256            # K (multiple of group_size=128 and pack_num=8)
    out_features = 256           # O
    n_group = in_features // GROUP_SIZE
    batch_shape = (2, 8)         # x: (2, 8, 256)

    key = jax.random.PRNGKey(0)
    k_w, k_z, k_s, k_b, k_x = jax.random.split(key, 5)

    int_w = jax.random.randint(k_w, (out_features, in_features), 0, 16,
                               dtype=jnp.int32)
    zeros = jax.random.randint(k_z, (out_features, n_group), 0, 16,
                               dtype=jnp.int32)
    scales_core = jax.random.uniform(k_s, (out_features, n_group),
                                     jnp.float32, 0.01, 0.1)
    bias = jax.random.normal(k_b, (out_features,), jnp.float32)
    x = jax.random.normal(k_x, batch_shape + (in_features,), jnp.float32)

    # Pack exactly like AWQLinear.from_linear does.
    qweight = jnp.asarray(_pack_nibbles(np.asarray(int_w).astype(np.uint32),
                                        in_features // PACK_NUM))
    qzeros = jnp.asarray(_pack_nibbles(np.asarray(zeros).astype(np.uint32),
                                       ceil_div(n_group, PACK_NUM)))
    scales_padded = jnp.zeros((out_features, align_up(n_group, PACK_NUM)),
                              jnp.float32).at[:, :n_group].set(scales_core)

    # One-time weight preparation, then forward.
    qweight_t, scales_t, nzs_t, bias2d, o_real = prepare_awq_params(
        qweight, qzeros, scales_padded, bias)
    out = awq_linear(x, qweight_t, scales_t, nzs_t, bias2d, o_real)
    out = jax.block_until_ready(out)
    assert out.shape == batch_shape + (out_features,)

    x2 = x.reshape(-1, in_features)

    # Reference 1: replicates the kernel's math exactly (bf16 operands,
    # folded zero-point) -- verifies packing / dequant / indexing.
    xb = x2.astype(jnp.bfloat16).astype(jnp.float32)
    s_b = scales_core.astype(jnp.bfloat16).astype(jnp.float32)        # (O, G)
    qs = (int_w.astype(jnp.float32)
          * jnp.repeat(s_b, GROUP_SIZE, axis=1)).astype(jnp.bfloat16).astype(jnp.float32)
    xg_ref = xb.reshape(-1, n_group, GROUP_SIZE).sum(-1)
    xg_ref = xg_ref.astype(jnp.bfloat16).astype(jnp.float32)
    nzs_ref = (-(zeros.astype(jnp.float32) * scales_core)
               ).astype(jnp.bfloat16).astype(jnp.float32)             # (O, G)
    ref1 = (xb @ qs.T + xg_ref @ nzs_ref.T + bias
            ).reshape(batch_shape + (out_features,))
    np.testing.assert_allclose(np.asarray(out), np.asarray(ref1),
                               rtol=1e-2, atol=2e-2)

    # Reference 2: full-precision AWQ semantics (loose: bf16 MXU operands).
    w_f32 = ((int_w.astype(jnp.float32)
              .reshape(out_features, n_group, GROUP_SIZE)
              - zeros[:, :, None].astype(jnp.float32))
             * scales_core[:, :, None]).reshape(out_features, in_features)
    ref2 = (x2 @ w_f32.T + bias).reshape(batch_shape + (out_features,))
    np.testing.assert_allclose(np.asarray(out), np.asarray(ref2),
                               rtol=5e-2, atol=3e-1)

    print("KERNEL_OK")
</pallas_src>

<mosaic_0001>
module attributes {stable_mosaic.version = 11 : i64} {
  func.func @_awq_matmul_kernel(%arg0: i32, %arg1: i32, %arg2: i32, %arg3: memref<16x256xbf16, #tpu.memory_space<vmem>>, %arg4: memref<16x8xbf16, #tpu.memory_space<vmem>>, %arg5: memref<32x128xi32, #tpu.memory_space<vmem>>, %arg6: memref<2x128xbf16, #tpu.memory_space<vmem>>, %arg7: memref<8x128xbf16, #tpu.memory_space<vmem>>, %arg8: memref<1x128xf32, #tpu.memory_space<vmem>>, %arg9: memref<16x128xf32, #tpu.memory_space<vmem>>, %arg10: memref<16x128xf32, #tpu.memory_space<vmem>>, %arg11: memref<2x128x128xbf16, #tpu.memory_space<vmem>>) attributes {dimension_semantics = [#tpu.dimension_semantics<parallel>, #tpu.dimension_semantics<parallel>, #tpu.dimension_semantics<arbitrary>], iteration_bounds = array<i64: 1, 2, 1>, scalar_prefetch = 0 : i64, scratch_operands = 2 : i64, tpu.core_type = #tpu.core_type<tc>, window_params = [{transform_indices = @transform_0, window_bounds = array<i64: 16, 256>}, {transform_indices = @transform_1, window_bounds = array<i64: 16, 8>}, {transform_indices = @transform_2, window_bounds = array<i64: 32, 128>}, {transform_indices = @transform_3, window_bounds = array<i64: 2, 128>}, {transform_indices = @transform_4, window_bounds = array<i64: 8, 128>}, {transform_indices = @transform_5, window_bounds = array<i64: 1, 128>}, {transform_indices = @transform_6, window_bounds = array<i64: 16, 128>}]} {
    %c0_i32 = arith.constant 0 : i32
    %0 = arith.cmpi eq, %arg2, %c0_i32 : i32
    %1 = arith.extui %0 : i1 to i32
    %c0_i32_0 = arith.constant 0 : i32
    %2 = arith.cmpi ne, %1, %c0_i32_0 : i32
    scf.if %2 {
      %c0_40 = arith.constant 0 : index
      %c0_41 = arith.constant 0 : index
      %96 = vector.load %arg4[%c0_40, %c0_41] : memref<16x8xbf16, #tpu.memory_space<vmem>>, vector<16x8xbf16>
      %c0_42 = arith.constant 0 : index
      %c0_43 = arith.constant 0 : index
      %97 = vector.load %arg7[%c0_42, %c0_43] : memref<8x128xbf16, #tpu.memory_space<vmem>>, vector<8x128xbf16>
      %cst_44 = arith.constant dense<0.000000e+00> : vector<16x128xf32>
      %98 = tpu.matmul %96, %97, %cst_44 {dimension_numbers = #tpu.dot_dimension_numbers<[1], [0], [0], [1], [0, 0, 1, 1], [], []>} : vector<16x8xbf16>, vector<8x128xbf16>, vector<16x128xf32> -> vector<16x128xf32>
      %c0_45 = arith.constant 0 : index
      %c0_46 = arith.constant 0 : index
      %99 = vector.load %arg10[%c0_45, %c0_46] : memref<16x128xf32, #tpu.memory_space<vmem>>, vector<16x128xf32>
      tpu.vector_store %arg10[%c0_45, %c0_46], %98 {strides = array<i32>} : memref<16x128xf32, #tpu.memory_space<vmem>>, vector<16x128xf32>,
    } else {
    }
    %c0 = arith.constant 0 : index
    %c0_1 = arith.constant 0 : index
    %3 = vector.load %arg5[%c0, %c0_1] : memref<32x128xi32, #tpu.memory_space<vmem>>, vector<32x128xi32>
    %c0_2 = arith.constant 0 : index
    %c0_3 = arith.constant 0 : index
    %4 = vector.load %arg6[%c0_2, %c0_3] : memref<2x128xbf16, #tpu.memory_space<vmem>>, vector<2x128xbf16>
    %5 = vector.shape_cast %4 : vector<2x128xbf16> to vector<2x1x128xbf16>
    %c0_i32_4 = arith.constant 0 : i32
    %6 = vector.broadcast %c0_i32_4 : i32 to vector<32x128xi32>
    %7 = arith.shrsi %3, %6 : vector<32x128xi32>
    %c15_i32 = arith.constant 15 : i32
    %8 = vector.broadcast %c15_i32 : i32 to vector<32x128xi32>
    %9 = arith.andi %7, %8 : vector<32x128xi32>
    %10 = arith.sitofp %9 : vector<32x128xi32> to vector<32x128xf32>
    %11 = arith.truncf %10 : vector<32x128xf32> to vector<32x128xbf16>
    %12 = vector.shape_cast %11 : vector<32x128xbf16> to vector<2x16x128xbf16>
    %13 = vector.broadcast %5 : vector<2x1x128xbf16> to vector<2x16x128xbf16>
    %14 = arith.mulf %12, %13 : vector<2x16x128xbf16>
    %c0_5 = arith.constant 0 : index
    %c0_6 = arith.constant 0 : index
    %c0_7 = arith.constant 0 : index
    %15 = vector.load %arg11[%c0_5, %c0_6, %c0_7] : memref<2x128x128xbf16, #tpu.memory_space<vmem>>, vector<2x16x128xbf16>
    tpu.vector_store %arg11[%c0_5, %c0_6, %c0_7], %14 {strides = array<i32>} : memref<2x128x128xbf16, #tpu.memory_space<vmem>>, vector<2x16x128xbf16>,
    %c4_i32 = arith.constant 4 : i32
    %16 = vector.broadcast %c4_i32 : i32 to vector<32x128xi32>
    %17 = arith.shrsi %3, %16 : vector<32x128xi32>
    %c15_i32_8 = arith.constant 15 : i32
    %18 = vector.broadcast %c15_i32_8 : i32 to vector<32x128xi32>
    %19 = arith.andi %17, %18 : vector<32x128xi32>
    %20 = arith.sitofp %19 : vector<32x128xi32> to vector<32x128xf32>
    %21 = arith.truncf %20 : vector<32x128xf32> to vector<32x128xbf16>
    %22 = vector.shape_cast %21 : vector<32x128xbf16> to vector<2x16x128xbf16>
    %23 = vector.broadcast %5 : vector<2x1x128xbf16> to vector<2x16x128xbf16>
    %24 = arith.mulf %22, %23 : vector<2x16x128xbf16>
    %c0_9 = arith.constant 0 : index
    %c16 = arith.constant 16 : index
    %c0_10 = arith.constant 0 : index
    %25 = vector.load %arg11[%c0_9, %c16, %c0_10] : memref<2x128x128xbf16, #tpu.memory_space<vmem>>, vector<2x16x128xbf16>
    tpu.vector_store %arg11[%c0_9, %c16, %c0_10], %24 {strides = array<i32>} : memref<2x128x128xbf16, #tpu.memory_space<vmem>>, vector<2x16x128xbf16>,
    %c8_i32 = arith.constant 8 : i32
    %26 = vector.broadcast %c8_i32 : i32 to vector<32x128xi32>
    %27 = arith.shrsi %3, %26 : vector<32x128xi32>
    %c15_i32_11 = arith.constant 15 : i32
    %28 = vector.broadcast %c15_i32_11 : i32 to vector<32x128xi32>
    %29 = arith.andi %27, %28 : vector<32x128xi32>
    %30 = arith.sitofp %29 : vector<32x128xi32> to vector<32x128xf32>
    %31 = arith.truncf %30 : vector<32x128xf32> to vector<32x128xbf16>
    %32 = vector.shape_cast %31 : vector<32x128xbf16> to vector<2x16x128xbf16>
    %33 = vector.broadcast %5 : vector<2x1x128xbf16> to vector<2x16x128xbf16>
    %34 = arith.mulf %32, %33 : vector<2x16x128xbf16>
    %c0_12 = arith.constant 0 : index
    %c32 = arith.constant 32 : index
    %c0_13 = arith.constant 0 : index
    %35 = vector.load %arg11[%c0_12, %c32, %c0_13] : memref<2x128x128xbf16, #tpu.memory_space<vmem>>, vector<2x16x128xbf16>
    tpu.vector_store %arg11[%c0_12, %c32, %c0_13], %34 {strides = array<i32>} : memref<2x128x128xbf16, #tpu.memory_space<vmem>>, vector<2x16x128xbf16>,
    %c12_i32 = arith.constant 12 : i32
    %36 = vector.broadcast %c12_i32 : i32 to vector<32x128xi32>
    %37 = arith.shrsi %3, %36 : vector<32x128xi32>
    %c15_i32_14 = arith.constant 15 : i32
    %38 = vector.broadcast %c15_i32_14 : i32 to vector<32x128xi32>
    %39 = arith.andi %37, %38 : vector<32x128xi32>
    %40 = arith.sitofp %39 : vector<32x128xi32> to vector<32x128xf32>
    %41 = arith.truncf %40 : vector<32x128xf32> to vector<32x128xbf16>
    %42 = vector.shape_cast %41 : vector<32x128xbf16> to vector<2x16x128xbf16>
    %43 = vector.broadcast %5 : vector<2x1x128xbf16> to vector<2x16x128xbf16>
    %44 = arith.mulf %42, %43 : vector<2x16x128xbf16>
    %c0_15 = arith.constant 0 : index
    %c48 = arith.constant 48 : index
    %c0_16 = arith.constant 0 : index
    %45 = vector.load %arg11[%c0_15, %c48, %c0_16] : memref<2x128x128xbf16, #tpu.memory_space<vmem>>, vector<2x16x128xbf16>
    tpu.vector_store %arg11[%c0_15, %c48, %c0_16], %44 {strides = array<i32>} : memref<2x128x128xbf16, #tpu.memory_space<vmem>>, vector<2x16x128xbf16>,
    %c16_i32 = arith.constant 16 : i32
    %46 = vector.broadcast %c16_i32 : i32 to vector<32x128xi32>
    %47 = arith.shrsi %3, %46 : vector<32x128xi32>
    %c15_i32_17 = arith.constant 15 : i32
    %48 = vector.broadcast %c15_i32_17 : i32 to vector<32x128xi32>
    %49 = arith.andi %47, %48 : vector<32x128xi32>
    %50 = arith.sitofp %49 : vector<32x128xi32> to vector<32x128xf32>
    %51 = arith.truncf %50 : vector<32x128xf32> to vector<32x128xbf16>
    %52 = vector.shape_cast %51 : vector<32x128xbf16> to vector<2x16x128xbf16>
    %53 = vector.broadcast %5 : vector<2x1x128xbf16> to vector<2x16x128xbf16>
    %54 = arith.mulf %52, %53 : vector<2x16x128xbf16>
    %c0_18 = arith.constant 0 : index
    %c64 = arith.constant 64 : index
    %c0_19 = arith.constant 0 : index
    %55 = vector.load %arg11[%c0_18, %c64, %c0_19] : memref<2x128x128xbf16, #tpu.memory_space<vmem>>, vector<2x16x128xbf16>
    tpu.vector_store %arg11[%c0_18, %c64, %c0_19], %54 {strides = array<i32>} : memref<2x128x128xbf16, #tpu.memory_space<vmem>>, vector<2x16x128xbf16>,
    %c20_i32 = arith.constant 20 : i32
    %56 = vector.broadcast %c20_i32 : i32 to vector<32x128xi32>
    %57 = arith.shrsi %3, %56 : vector<32x128xi32>
    %c15_i32_20 = arith.constant 15 : i32
    %58 = vector.broadcast %c15_i32_20 : i32 to vector<32x128xi32>
    %59 = arith.andi %57, %58 : vector<32x128xi32>
    %60 = arith.sitofp %59 : vector<32x128xi32> to vector<32x128xf32>
    %61 = arith.truncf %60 : vector<32x128xf32> to vector<32x128xbf16>
    %62 = vector.shape_cast %61 : vector<32x128xbf16> to vector<2x16x128xbf16>
    %63 = vector.broadcast %5 : vector<2x1x128xbf16> to vector<2x16x128xbf16>
    %64 = arith.mulf %62, %63 : vector<2x16x128xbf16>
    %c0_21 = arith.constant 0 : index
    %c80 = arith.constant 80 : index
    %c0_22 = arith.constant 0 : index
    %65 = vector.load %arg11[%c0_21, %c80, %c0_22] : memref<2x128x128xbf16, #tpu.memory_space<vmem>>, vector<2x16x128xbf16>
    tpu.vector_store %arg11[%c0_21, %c80, %c0_22], %64 {strides = array<i32>} : memref<2x128x128xbf16, #tpu.memory_space<vmem>>, vector<2x16x128xbf16>,
    %c24_i32 = arith.constant 24 : i32
    %66 = vector.broadcast %c24_i32 : i32 to vector<32x128xi32>
    %67 = arith.shrsi %3, %66 : vector<32x128xi32>
    %c15_i32_23 = arith.constant 15 : i32
    %68 = vector.broadcast %c15_i32_23 : i32 to vector<32x128xi32>
    %69 = arith.andi %67, %68 : vector<32x128xi32>
    %70 = arith.sitofp %69 : vector<32x128xi32> to vector<32x128xf32>
    %71 = arith.truncf %70 : vector<32x128xf32> to vector<32x128xbf16>
    %72 = vector.shape_cast %71 : vector<32x128xbf16> to vector<2x16x128xbf16>
    %73 = vector.broadcast %5 : vector<2x1x128xbf16> to vector<2x16x128xbf16>
    %74 = arith.mulf %72, %73 : vector<2x16x128xbf16>
    %c0_24 = arith.constant 0 : index
    %c96 = arith.constant 96 : index
    %c0_25 = arith.constant 0 : index
    %75 = vector.load %arg11[%c0_24, %c96, %c0_25] : memref<2x128x128xbf16, #tpu.memory_space<vmem>>, vector<2x16x128xbf16>
    tpu.vector_store %arg11[%c0_24, %c96, %c0_25], %74 {strides = array<i32>} : memref<2x128x128xbf16, #tpu.memory_space<vmem>>, vector<2x16x128xbf16>,
    %c28_i32 = arith.constant 28 : i32
    %76 = vector.broadcast %c28_i32 : i32 to vector<32x128xi32>
    %77 = arith.shrsi %3, %76 : vector<32x128xi32>
    %c15_i32_26 = arith.constant 15 : i32
    %78 = vector.broadcast %c15_i32_26 : i32 to vector<32x128xi32>
    %79 = arith.andi %77, %78 : vector<32x128xi32>
    %80 = arith.sitofp %79 : vector<32x128xi32> to vector<32x128xf32>
    %81 = arith.truncf %80 : vector<32x128xf32> to vector<32x128xbf16>
    %82 = vector.shape_cast %81 : vector<32x128xbf16> to vector<2x16x128xbf16>
    %83 = vector.broadcast %5 : vector<2x1x128xbf16> to vector<2x16x128xbf16>
    %84 = arith.mulf %82, %83 : vector<2x16x128xbf16>
    %c0_27 = arith.constant 0 : index
    %c112 = arith.constant 112 : index
    %c0_28 = arith.constant 0 : index
    %85 = vector.load %arg11[%c0_27, %c112, %c0_28] : memref<2x128x128xbf16, #tpu.memory_space<vmem>>, vector<2x16x128xbf16>
    tpu.vector_store %arg11[%c0_27, %c112, %c0_28], %84 {strides = array<i32>} : memref<2x128x128xbf16, #tpu.memory_space<vmem>>, vector<2x16x128xbf16>,
    %c0_29 = arith.constant 0 : index
    %c0_30 = arith.constant 0 : index
    %c0_31 = arith.constant 0 : index
    %86 = vector.load %arg11[%c0_29, %c0_30, %c0_31] : memref<2x128x128xbf16, #tpu.memory_space<vmem>>, vector<2x128x128xbf16>
    %87 = vector.shape_cast %86 : vector<2x128x128xbf16> to vector<256x128xbf16>
    %c0_32 = arith.constant 0 : index
    %c0_33 = arith.constant 0 : index
    %88 = vector.load %arg10[%c0_32, %c0_33] : memref<16x128xf32, #tpu.memory_space<vmem>>, vector<16x128xf32>
    %c0_34 = arith.constant 0 : index
    %c0_35 = arith.constant 0 : index
    %89 = vector.load %arg3[%c0_34, %c0_35] : memref<16x256xbf16, #tpu.memory_space<vmem>>, vector<16x256xbf16>
    %cst = arith.constant dense<0.000000e+00> : vector<16x128xf32>
    %90 = tpu.matmul %89, %87, %cst {dimension_numbers = #tpu.dot_dimension_numbers<[1], [0], [0], [1], [0, 0, 1, 1], [], []>} : vector<16x256xbf16>, vector<256x128xbf16>, vector<16x128xf32> -> vector<16x128xf32>
    %91 = arith.addf %88, %90 : vector<16x128xf32>
    %c0_36 = arith.constant 0 : index
    %c0_37 = arith.constant 0 : index
    %92 = vector.load %arg10[%c0_36, %c0_37] : memref<16x128xf32, #tpu.memory_space<vmem>>, vector<16x128xf32>
    tpu.vector_store %arg10[%c0_36, %c0_37], %91 {strides = array<i32>} : memref<16x128xf32, #tpu.memory_space<vmem>>, vector<16x128xf32>,
    %c0_i32_38 = arith.constant 0 : i32
    %93 = arith.cmpi eq, %arg2, %c0_i32_38 : i32
    %94 = arith.extui %93 : i1 to i32
    %c0_i32_39 = arith.constant 0 : i32
    %95 = arith.cmpi ne, %94, %c0_i32_39 : i32
    scf.if %95 {
      %c0_40 = arith.constant 0 : index
      %c0_41 = arith.constant 0 : index
      %96 = vector.load %arg10[%c0_40, %c0_41] : memref<16x128xf32, #tpu.memory_space<vmem>>, vector<16x128xf32>
      %c0_42 = arith.constant 0 : index
      %c0_43 = arith.constant 0 : index
      %97 = vector.load %arg8[%c0_42, %c0_43] : memref<1x128xf32, #tpu.memory_space<vmem>>, vector<1x128xf32>
      %98 = vector.broadcast %97 : vector<1x128xf32> to vector<16x128xf32>
      %99 = arith.addf %96, %98 : vector<16x128xf32>
      %c0_44 = arith.constant 0 : index
      %c0_45 = arith.constant 0 : index
      %100 = vector.load %arg9[%c0_44, %c0_45] : memref<16x128xf32, #tpu.memory_space<vmem>>, vector<16x128xf32>
      tpu.vector_store %arg9[%c0_44, %c0_45], %99 {strides = array<i32>} : memref<16x128xf32, #tpu.memory_space<vmem>>, vector<16x128xf32>,
    } else {
    }
    return
  }
  func.func @transform_0(%arg0: i32, %arg1: i32, %arg2: i32) -> (i32, i32) {
    %c0_i32 = arith.constant 0 : i32
    return %arg0, %arg2 : i32, i32
  }
  func.func @transform_1(%arg0: i32, %arg1: i32, %arg2: i32) -> (i32, i32) {
    %c0_i32 = arith.constant 0 : i32
    %c0_i32_0 = arith.constant 0 : i32
    return %arg0, %c0_i32 : i32, i32
  }
  func.func @transform_2(%arg0: i32, %arg1: i32, %arg2: i32) -> (i32, i32) {
    %c0_i32 = arith.constant 0 : i32
    return %arg2, %arg1 : i32, i32
  }
  func.func @transform_3(%arg0: i32, %arg1: i32, %arg2: i32) -> (i32, i32) {
    %c0_i32 = arith.constant 0 : i32
    return %arg2, %arg1 : i32, i32
  }
  func.func @transform_4(%arg0: i32, %arg1: i32, %arg2: i32) -> (i32, i32) {
    %c0_i32 = arith.constant 0 : i32
    %c0_i32_0 = arith.constant 0 : i32
    return %c0_i32, %arg1 : i32, i32
  }
  func.func @transform_5(%arg0: i32, %arg1: i32, %arg2: i32) -> (i32, i32) {
    %c0_i32 = arith.constant 0 : i32
    %c0_i32_0 = arith.constant 0 : i32
    return %c0_i32, %arg1 : i32, i32
  }
  func.func @transform_6(%arg0: i32, %arg1: i32, %arg2: i32) -> (i32, i32) {
    %c0_i32 = arith.constant 0 : i32
    return %arg0, %arg1 : i32, i32
  }
}

</mosaic_0001>

<llo_original>
// kernel: tpu_custom_call.1
$region0: #{tpu_custom_call.1}
  #allocation0 [shape = 'u32[]', space=smem, size = 0x4, offset = 0x4, fixed_abs, tag = 'smem constant byte address 0x4 - core index']
  #allocation1 [shape = 'u32[144,128]{1,0:T(1,128)}', space=vmem, size = 0x12000, scoped, tag = 'internal scratch']
  #allocation2 [shape = 'f32[16,128]{1,0:T(8,128)}', space=vmem, size = 0x2000, scoped, tag = 'scratch operand']
  #allocation3 [shape = 'bf16[2,128,128]{2,1,0:T(16,128)(2,1)}', space=vmem, size = 0x10000, scoped, tag = 'scratch operand']
  %s0 = inlined_call_operand.hbm [shape: bf16[16,256], index: 0, kind: input, shape index: {}]
  %s1 = inlined_call_operand.vmem [shape: bf16[16,8], index: 1, kind: input, shape index: {}]
  %s2 = inlined_call_operand.hbm [shape: s32[32,256], index: 2, kind: input, shape index: {}]
  %s3 = inlined_call_operand.vmem [shape: bf16[2,256], index: 3, kind: input, shape index: {}]
  %s4 = inlined_call_operand.vmem [shape: bf16[8,256], index: 4, kind: input, shape index: {}]
  %s5 = inlined_call_operand.vmem [shape: f32[1,256], index: 5, kind: input, shape index: {}]
  %s6 = inlined_call_operand.hbm [shape: f32[16,256], index: 6, kind: output, shape index: {}]
  %s7 = sld [smem:[#allocation0]]
  $region73: #{tpu_custom_call.1} parent=0
    _
  %s9 = ssub.s32 1, %s7
  %s10 = scalar_select 0, %s9, %s7
  $region1: #{tpu_custom_call.1} parent=0
    #allocation4 [shape = 'u8[8192]{0}', space=vmem, size = 0x2000, scoped, tag = 'input window, operand 0, single buffered']
    #allocation5 [shape = 's32[2]{0}', space=sflag, size = 0x8, scoped, tag = 'scoped memory for tpu_custom_call.1']
    #allocation6 [shape = 's32[2]{0}', space=sflag, size = 0x8, scoped, tag = 'scoped memory for tpu_custom_call.1']
    #allocation7 [shape = 'u8[32768]{0}', space=vmem, size = 0x8000, scoped, tag = 'input window, operand 2']
    #allocation8 [shape = 's32[2]{0}', space=sflag, size = 0x8, scoped, tag = 'scoped memory for tpu_custom_call.1']
    #allocation9 [shape = 'u8[16384]{0}', space=vmem, size = 0x4000, scoped, tag = 'output window, operand 0']
    %11 = vsyncpa [#allocation5], 0
    %12 = vsyncpa [#allocation8], 0
    %s13 = scalar_lea.sflag [#allocation8], 1
    %14 = vsyncpa %s13, 0
    %15 = vsyncpa [#allocation6], 0
    %s16 = scalar_lea.sflag [#allocation6], 1
    %17 = vsyncpa %s16, 0
    loop: start=0, step=1, limit=4
    $region2: #{tpu_custom_call.1} parent=1 // loop_pre_header
      _
    $region3: #{tpu_custom_call.1} parent=1 // loop_header
      %s19 = sphi 0, %s23
      %p20 = scmp.ge.s32.totalorder %s19, 4
      %s26 = sphi 0, %s45
      %s27 = sphi 0, %s41
      %s28 = sphi 0, %s37
      %s29 = sphi 0, %s26
      %s30 = sphi 0, %s27
      %s31 = sphi 0, %s28
      %s32 = sphi 0, %s29
      %s33 = sphi 0, %s30
      %s34 = sphi 0, %s31
      %s50 = sphi 0, %s52
      %s53 = sphi 0, %s50
      %s54 = sphi 0, %s53
      %s70 = sphi 0, %s54
      %s76 = sphi 0, %s78
      %s79 = sphi 0, %s76
      %s80 = sphi 0, %s79
      %s96 = sphi 0, %s80
      %s104 = sphi 0, %s106
      %s107 = sphi 0, %s104
      %s108 = sphi 0, %s107
      %s124 = sphi 0, %s108
      %s132 = sphi 0, %s134
      %s135 = sphi 0, %s132
      %s136 = sphi 0, %s135
      %s152 = sphi 0, %s136
      %s158 = sphi 0, %s160
      %s161 = sphi 0, %s158
      %s162 = sphi 0, %s161
      %s178 = sphi 0, %s162
      %s184 = sphi 0, %s186
      %s187 = sphi 0, %s184
      %s188 = sphi 0, %s187
      %s204 = sphi 0, %s188
      %s212 = sphi 0, %s214
      %s215 = sphi 0, %s212
      %s216 = sphi 0, %s215
      %s232 = sphi 0, %s216
    $region4: #{tpu_custom_call.1} parent=1 // loop_header_branch
      %22 = sbr.rel (%p20) target = $region8
    $region5: #{tpu_custom_call.1} parent=1 // loop_body
      %s24 = ssub.s32 %s19, 1
      %s25 = ssub.s32 %s19, 2
      %s35 = sadd.s32 1, %s28
      %p36 = scmp.ge.s32.totalorder %s35, 1
      %s37 = scalar_select %p36, 0, %s35
      %s38 = sadd.s32 1, %s27
      %s39 = scalar_select %p36, %s38, %s27
      %p40 = scmp.ge.s32.totalorder %s39, 2
      %s41 = scalar_select %p40, 0, %s39
      %s42 = sadd.s32 1, %s26
      %s43 = scalar_select %p40, %s42, %s26
      %p44 = scmp.ge.s32.totalorder %s43, 1
      %s45 = scalar_select %p44, 0, %s43
      %s46 = ssub.s32 %s26, %s45
      %s47 = ssub.s32 %s28, %s37
      %s48 = sor.u32 %s46, %s47
      %p49 = scmp.eq.s32.totalorder %s48, 0
      %s51 = sadd.s32 %s50, 1
      %s52 = scalar_select %p49, %s50, %s51
      %p55 = pneg %p49
      %p56 = scmp.eq.s32.totalorder %s19, 1
      %p57 = por %p55, %p56
      %p58 = scmp.ne.s32.totalorder %s50, %s53
      %p59 = scmp.eq.s32.totalorder %s19, 0
      %p60 = por %p58, %p59
      %p61 = scmp.ne.s32.totalorder %s50, %s53
      %p62 = scmp.eq.s32.totalorder %s24, 1
      %p63 = por %p61, %p62
      %p64 = scmp.ne.s32.totalorder %s53, %s54
      %p65 = scmp.eq.s32.totalorder %s24, 0
      %p66 = por %p64, %p65
      %p67 = scmp.ne.s32.totalorder %s53, %s54
      %p68 = scmp.eq.s32.totalorder %s25, 1
      %p69 = por %p67, %p68
      %p71 = scmp.ne.s32.totalorder %s54, %s70
      %p72 = scmp.eq.s32.totalorder %s25, 0
      %p73 = por %p71, %p72
      %s74 = ssub.s32 %s26, %s45
      %p75 = scmp.eq.s32.totalorder %s74, 0
      %s77 = sadd.s32 %s76, 1
      %s78 = scalar_select %p75, %s76, %s77
      %p81 = pneg %p75
      %p82 = scmp.eq.s32.totalorder %s19, 1
      %p83 = por %p81, %p82
      %p84 = scmp.ne.s32.totalorder %s76, %s79
      %p85 = scmp.eq.s32.totalorder %s19, 0
      %p86 = por %p84, %p85
      %p87 = scmp.ne.s32.totalorder %s76, %s79
      %p88 = scmp.eq.s32.totalorder %s24, 1
      %p89 = por %p87, %p88
      %p90 = scmp.ne.s32.totalorder %s79, %s80
      %p91 = scmp.eq.s32.totalorder %s24, 0
      %p92 = por %p90, %p91
      %p93 = scmp.ne.s32.totalorder %s79, %s80
      %p94 = scmp.eq.s32.totalorder %s25, 1
      %p95 = por %p93, %p94
      %p97 = scmp.ne.s32.totalorder %s80, %s96
      %p98 = scmp.eq.s32.totalorder %s25, 0
      %p99 = por %p97, %p98
      %s100 = ssub.s32 %s28, %s37
      %s101 = ssub.s32 %s27, %s41
      %s102 = sor.u32 %s100, %s101
      %p103 = scmp.eq.s32.totalorder %s102, 0
      %s105 = sadd.s32 %s104, 1
      %s106 = scalar_select %p103, %s104, %s105
      %p109 = pneg %p103
      %p110 = scmp.eq.s32.totalorder %s19, 1
      %p111 = por %p109, %p110
      %p112 = scmp.ne.s32.totalorder %s104, %s107
      %p113 = scmp.eq.s32.totalorder %s19, 0
      %p114 = por %p112, %p113
      %p115 = scmp.ne.s32.totalorder %s104, %s107
      %p116 = scmp.eq.s32.totalorder %s24, 1
      %p117 = por %p115, %p116
      %p118 = scmp.ne.s32.totalorder %s107, %s108
      %p119 = scmp.eq.s32.totalorder %s24, 0
      %p120 = por %p118, %p119
      %p121 = scmp.ne.s32.totalorder %s107, %s108
      %p122 = scmp.eq.s32.totalorder %s25, 1
      %p123 = por %p121, %p122
      %p125 = scmp.ne.s32.totalorder %s108, %s124
      %p126 = scmp.eq.s32.totalorder %s25, 0
      %p127 = por %p125, %p126
      %s128 = ssub.s32 %s28, %s37
      %s129 = ssub.s32 %s27, %s41
      %s130 = sor.u32 %s128, %s129
      %p131 = scmp.eq.s32.totalorder %s130, 0
      %s133 = sadd.s32 %s132, 1
      %s134 = scalar_select %p131, %s132, %s133
      %p137 = pneg %p131
      %p138 = scmp.eq.s32.totalorder %s19, 1
      %p139 = por %p137, %p138
      %p140 = scmp.ne.s32.totalorder %s132, %s135
      %p141 = scmp.eq.s32.totalorder %s19, 0
      %p142 = por %p140, %p141
      %p143 = scmp.ne.s32.totalorder %s132, %s135
      %p144 = scmp.eq.s32.totalorder %s24, 1
      %p145 = por %p143, %p144
      %p146 = scmp.ne.s32.totalorder %s135, %s136
      %p147 = scmp.eq.s32.totalorder %s24, 0
      %p148 = por %p146, %p147
      %p149 = scmp.ne.s32.totalorder %s135, %s136
      %p150 = scmp.eq.s32.totalorder %s25, 1
      %p151 = por %p149, %p150
      %p153 = scmp.ne.s32.totalorder %s136, %s152
      %p154 = scmp.eq.s32.totalorder %s25, 0
      %p155 = por %p153, %p154
      %s156 = ssub.s32 %s27, %s41
      %p157 = scmp.eq.s32.totalorder %s156, 0
      %s159 = sadd.s32 %s158, 1
      %s160 = scalar_select %p157, %s158, %s159
      %p163 = pneg %p157
      %p164 = scmp.eq.s32.totalorder %s19, 1
      %p165 = por %p163, %p164
      %p166 = scmp.ne.s32.totalorder %s158, %s161
      %p167 = scmp.eq.s32.totalorder %s19, 0
      %p168 = por %p166, %p167
      %p169 = scmp.ne.s32.totalorder %s158, %s161
      %p170 = scmp.eq.s32.totalorder %s24, 1
      %p171 = por %p169, %p170
      %p172 = scmp.ne.s32.totalorder %s161, %s162
      %p173 = scmp.eq.s32.totalorder %s24, 0
      %p174 = por %p172, %p173
      %p175 = scmp.ne.s32.totalorder %s161, %s162
      %p176 = scmp.eq.s32.totalorder %s25, 1
      %p177 = por %p175, %p176
      %p179 = scmp.ne.s32.totalorder %s162, %s178
      %p180 = scmp.eq.s32.totalorder %s25, 0
      %p181 = por %p179, %p180
      %s182 = ssub.s32 %s27, %s41
      %p183 = scmp.eq.s32.totalorder %s182, 0
      %s185 = sadd.s32 %s184, 1
      %s186 = scalar_select %p183, %s184, %s185
      %p189 = pneg %p183
      %p190 = scmp.eq.s32.totalorder %s19, 1
      %p191 = por %p189, %p190
      %p192 = scmp.ne.s32.totalorder %s184, %s187
      %p193 = scmp.eq.s32.totalorder %s19, 0
      %p194 = por %p192, %p193
      %p195 = scmp.ne.s32.totalorder %s184, %s187
      %p196 = scmp.eq.s32.totalorder %s24, 1
      %p197 = por %p195, %p196
      %p198 = scmp.ne.s32.totalorder %s187, %s188
      %p199 = scmp.eq.s32.totalorder %s24, 0
      %p200 = por %p198, %p199
      %p201 = scmp.ne.s32.totalorder %s187, %s188
      %p202 = scmp.eq.s32.totalorder %s25, 1
      %p203 = por %p201, %p202
      %p205 = scmp.ne.s32.totalorder %s188, %s204
      %p206 = scmp.eq.s32.totalorder %s25, 0
      %p207 = por %p205, %p206
      %s208 = ssub.s32 %s26, %s45
      %s209 = ssub.s32 %s27, %s41
      %s210 = sor.u32 %s208, %s209
      %p211 = scmp.eq.s32.totalorder %s210, 0
      %s213 = sadd.s32 %s212, 1
      %s214 = scalar_select %p211, %s212, %s213
      %p217 = pneg %p211
      %p218 = scmp.eq.s32.totalorder %s19, 1
      %p219 = por %p217, %p218
      %p220 = scmp.ne.s32.totalorder %s212, %s215
      %p221 = scmp.eq.s32.totalorder %s19, 0
      %p222 = por %p220, %p221
      %p223 = scmp.ne.s32.totalorder %s212, %s215
      %p224 = scmp.eq.s32.totalorder %s24, 1
      %p225 = por %p223, %p224
      %p226 = scmp.ne.s32.totalorder %s215, %s216
      %p227 = scmp.eq.s32.totalorder %s24, 0
      %p228 = por %p226, %p227
      %p229 = scmp.ne.s32.totalorder %s215, %s216
      %p230 = scmp.eq.s32.totalorder %s25, 1
      %p231 = por %p229, %p230
      %p233 = scmp.ne.s32.totalorder %s216, %s232
      %p234 = scmp.eq.s32.totalorder %s25, 0
      %p235 = por %p233, %p234
      %p236 = scmp.le.s32.totalorder 1, %s19
      %p237 = scmp.lt.s32.totalorder %s19, 3
      %p238 = pnand %p236, %p237
      %p239 = pneg %p238
      // Predicated region
      $region9: #{tpu_custom_call.1} parent=5 // pred_check
        _
      $region10: #{tpu_custom_call.1} parent=5 // pred_check_branch
        %241 = sbr.rel (%p238) target = $region12
      $region11: #{tpu_custom_call.1} parent=5 // pred_region
        %s242 = ssub.s32 %s19, 1
        // Predicated region
        $region13: #{tpu_custom_call.1} parent=11 // pred_check
          %p243 = pneg %p66
        $region14: #{tpu_custom_call.1} parent=11 // pred_check_branch
          %245 = sbr.rel (%p243) target = $region16
        $region15: #{tpu_custom_call.1} parent=11 // pred_region
          %s246 = smul.u32 2, %s29
          %s247 = smul.u32 2, %s31
          %s249 = ssub.s32 256, 256
          %250 = vsyncadd [#allocation5], %s249
          %s251 = smul.addr %s246, 2
          %s252 = sadd.s32 %s247, %s251
          %s253 = smul.addr %s252, 64
          %s254 = scalar_lea.hbm %s0, %s253
          %s255 = sshll.u32 [#allocation4], 4
          %s256 = int_to_ptr.vmem [resolvable:$true] %s255
          %261 = dma.hbm_to_vmem [thread:$0]  %s254, 256, %s256, [#allocation5], 128, 128, 8
        $region16: #{tpu_custom_call.1} parent=11 // pred_fallthru
          _
        // Predicated region
        $region17: #{tpu_custom_call.1} parent=11 // pred_check
          %p262 = pneg %p92
        $region18: #{tpu_custom_call.1} parent=11 // pred_check_branch
          %264 = sbr.rel (%p262) target = $region20
        $region19: #{tpu_custom_call.1} parent=11 // pred_region
          %s265 = smul.u32 2, %s29
          %p266 = scmp.lt.s32.totalorder %s265, 1
          %s267 = scalar_select %p266, %s265, 1
          %s268 = smul.addr %s267, 4
          %s269 = scalar_lea.vmem %s1, %s268
          %s270 = smul.u32 2, %s29
        $region20: #{tpu_custom_call.1} parent=11 // pred_fallthru
          _
      $region12: #{tpu_custom_call.1} parent=5 // pred_fallthru
        _
      %p271 = scmp.lt.s32.totalorder %s19, 2
      // Predicated region
      $region21: #{tpu_custom_call.1} parent=5 // pred_check
        %p272 = pneg %p271
      $region22: #{tpu_custom_call.1} parent=5 // pred_check_branch
        %274 = sbr.rel (%p272) target = $region24
      $region23: #{tpu_custom_call.1} parent=5 // pred_region
        // Predicated region
        $region25: #{tpu_custom_call.1} parent=23 // pred_check
          %p275 = pneg %p114
        $region26: #{tpu_custom_call.1} parent=23 // pred_check_branch
          %277 = sbr.rel (%p275) target = $region28
        $region27: #{tpu_custom_call.1} parent=23 // pred_region
          %s278 = sand.u32 %s104, 1
          %s279 = scalar_lea.sflag [#allocation8], %s278
          %s280 = sand.u32 %s104, 1
          %s281 = smul.addr %s280, 32
          %s282 = scalar_lea.vmem [#allocation7], %s281
          %s283 = smul.u32 4, %s28
          %s285 = ssub.s32 512, 512
          %286 = vsyncadd %s279, %s285
          %s287 = smul.addr %s283, 2
          %s288 = sadd.s32 %s27, %s287
          %s289 = smul.addr %s288, 128
          %s290 = scalar_lea.hbm %s2, %s289
          %s291 = sshll.u32 %s282, 4
          %s292 = int_to_ptr.vmem [resolvable:$true] %s291
          %297 = dma.hbm_to_vmem [thread:$0]  %s290, 512, %s292, %s279, 256, 128, 8
        $region28: #{tpu_custom_call.1} parent=23 // pred_fallthru
          _
        // Predicated region
        $region29: #{tpu_custom_call.1} parent=23 // pred_check
          %p298 = pneg %p142
        $region30: #{tpu_custom_call.1} parent=23 // pred_check_branch
          %300 = sbr.rel (%p298) target = $region32
        $region31: #{tpu_custom_call.1} parent=23 // pred_region
          %p301 = scmp.lt.s32.totalorder %s28, 0
          %s302 = scalar_select %p301, %s28, 0
          %p303 = scmp.lt.s32.totalorder %s27, 1
          %s304 = scalar_select %p303, %s27, 1
          %s305 = smul.addr %s302, 2
          %s306 = sadd.s32 %s304, %s305
          %s307 = scalar_lea.vmem %s3, %s306
        $region32: #{tpu_custom_call.1} parent=23 // pred_fallthru
          _
        // Predicated region
        $region33: #{tpu_custom_call.1} parent=23 // pred_check
          %p308 = pneg %p168
        $region34: #{tpu_custom_call.1} parent=23 // pred_check_branch
          %310 = sbr.rel (%p308) target = $region36
        $region35: #{tpu_custom_call.1} parent=23 // pred_region
          %p311 = scmp.lt.s32.totalorder %s27, 1
          %s312 = scalar_select %p311, %s27, 1
          %s313 = smul.addr %s312, 4
          %s314 = scalar_lea.vmem %s4, %s313
        $region36: #{tpu_custom_call.1} parent=23 // pred_fallthru
          _
        // Predicated region
        $region37: #{tpu_custom_call.1} parent=23 // pred_check
          %p315 = pneg %p194
        $region38: #{tpu_custom_call.1} parent=23 // pred_check_branch
          %317 = sbr.rel (%p315) target = $region40
        $region39: #{tpu_custom_call.1} parent=23 // pred_region
          %p318 = scmp.lt.s32.totalorder %s27, 1
          %s319 = scalar_select %p318, %s27, 1
          %s320 = scalar_lea.vmem %s5, %s319
        $region40: #{tpu_custom_call.1} parent=23 // pred_fallthru
          _
      $region24: #{tpu_custom_call.1} parent=5 // pred_fallthru
        _
      %p321 = scmp.le.s32.totalorder 1, %s19
      %p322 = scmp.lt.s32.totalorder %s19, 3
      %p323 = pnand %p321, %p322
      %p324 = pneg %p323
      // Predicated region
      $region41: #{tpu_custom_call.1} parent=5 // pred_check
        _
      $region42: #{tpu_custom_call.1} parent=5 // pred_check_branch
        %326 = sbr.rel (%p323) target = $region44
      $region43: #{tpu_custom_call.1} parent=5 // pred_region
        %s327 = ssub.s32 %s19, 1
        // Predicated region
        $region45: #{tpu_custom_call.1} parent=43 // pred_check
          %p328 = pneg %p66
        $region46: #{tpu_custom_call.1} parent=43 // pred_check_branch
          %330 = sbr.rel (%p328) target = $region48
        $region47: #{tpu_custom_call.1} parent=43 // pred_region
          %331 = dma.done [#allocation5], 256
        $region48: #{tpu_custom_call.1} parent=43 // pred_fallthru
          _
        %s332 = sand.u32 %s107, 1
        %s333 = scalar_lea.sflag [#allocation8], %s332
        %s334 = sand.u32 %s107, 1
        %s335 = smul.addr %s334, 32
        %s336 = scalar_lea.vmem [#allocation7], %s335
        // Predicated region
        $region49: #{tpu_custom_call.1} parent=43 // pred_check
          %p337 = pneg %p120
        $region50: #{tpu_custom_call.1} parent=43 // pred_check_branch
          %339 = sbr.rel (%p337) target = $region52
        $region51: #{tpu_custom_call.1} parent=43 // pred_region
          %340 = dma.done %s333, 512
        $region52: #{tpu_custom_call.1} parent=43 // pred_fallthru
          _
        %p341 = pneg %p66
        %p342 = pneg %p63
        %s343 = smul.u32 2, %s29
        %p344 = scmp.lt.s32.totalorder %s343, 1
        %s345 = scalar_select %p344, %s343, 1
        %s346 = smul.addr %s345, 4
        %s347 = scalar_lea.vmem %s1, %s346
        %p348 = pneg %p92
        %p349 = pneg %p89
        %s350 = sand.u32 %s107, 1
        %s351 = scalar_lea.sflag [#allocation8], %s350
        %s352 = sand.u32 %s107, 1
        %s353 = smul.addr %s352, 32
        %s354 = scalar_lea.vmem [#allocation7], %s353
        %p355 = pneg %p120
        %p356 = pneg %p117
        %p357 = scmp.lt.s32.totalorder %s31, 0
        %s358 = scalar_select %p357, %s31, 0
        %p359 = scmp.lt.s32.totalorder %s30, 1
        %s360 = scalar_select %p359, %s30, 1
        %s361 = smul.addr %s358, 2
        %s362 = sadd.s32 %s360, %s361
        %s363 = scalar_lea.vmem %s3, %s362
        %p364 = pneg %p148
        %p365 = pneg %p145
        %p366 = scmp.lt.s32.totalorder %s30, 1
        %s367 = scalar_select %p366, %s30, 1
        %s368 = smul.addr %s367, 4
        %s369 = scalar_lea.vmem %s4, %s368
        %p370 = pneg %p174
        %p371 = pneg %p171
        %p372 = scmp.lt.s32.totalorder %s30, 1
        %s373 = scalar_select %p372, %s30, 1
        %s374 = scalar_lea.vmem %s5, %s373
        %p375 = pneg %p200
        %p376 = pneg %p197
        %p377 = pneg %p228
        %p378 = pneg %p225
        %s379 = sand.u32 %s215, 1
        %s380 = scalar_lea.sflag [#allocation6], %s379
        %s381 = sand.u32 %s215, 1
        %s382 = smul.addr %s381, 16
        %s383 = scalar_lea.vmem [#allocation9], %s382
        %s384 = smul.u32 2, %s29
        %s385 = smul.u32 2, %s31
        %s386 = smul.u32 2, %s29
        %p387 = scmp.lt.s32.totalorder %s386, 1
        %s388 = scalar_select %p387, %s386, 1
        %s389 = smul.addr %s388, 4
        %s390 = scalar_lea.vmem %s1, %s389
        %s391 = smul.u32 2, %s29
        %s392 = smul.u32 4, %s31
        %p393 = scmp.lt.s32.totalorder %s31, 0
        %s394 = scalar_select %p393, %s31, 0
        %p395 = scmp.lt.s32.totalorder %s30, 1
        %s396 = scalar_select %p395, %s30, 1
        %s397 = smul.addr %s394, 2
        %s398 = sadd.s32 %s396, %s397
        %s399 = scalar_lea.vmem %s3, %s398
        %p400 = scmp.lt.s32.totalorder %s30, 1
        %s401 = scalar_select %p400, %s30, 1
        %s402 = smul.addr %s401, 4
        %s403 = scalar_lea.vmem %s4, %s402
        %p404 = scmp.lt.s32.totalorder %s30, 1
        %s405 = scalar_select %p404, %s30, 1
        %s406 = scalar_lea.vmem %s5, %s405
        %s407 = smul.u32 2, %s29
        %p409 = scmp.eq.s32.totalorder %s31, 0
        // Predicated region
        $region53: #{tpu_custom_call.1} parent=43 // pred_check
          %p410 = pneg %p409
        $region54: #{tpu_custom_call.1} parent=43 // pred_check_branch
          %412 = sbr.rel (%p410) target = $region56
        $region55: #{tpu_custom_call.1} parent=43 // pred_region
          %v413 = vld [vmem:[%s390] sm:$0xf]
          %v414 = vld [vmem:[%s390 + $0x4] sm:$0xf]
          %v415 = vld [vmem:[%s403] sm:$0xf]
          %v418 = vunpack.c.l.b16 %v413
          %v419 = vunpack.c.l.b16 %v414
          %v420 = vpack.c.b16 %v419, %v418
          %vm421 = vcmask 64512
          %v423 = vsel %vm421, %v420, 0
          %vm425 = vcmask 1043456
          %v427 = vsel %vm425, %v415, 0
          %429 = vmatprep.subr.bf16.mxu0 0
          %430 = vmatpush1.bf16.msra.mxu0 %v427
          %431 = vmatprep.subr.bf16.mxu0 0
          %432 = vmatpush1.bf16.msra.mxu0 0
          %433 = vmatprep.subr.bf16.mxu0 0
          %434 = vmatpush1.bf16.msra.mxu0 0
          %435 = vmatprep.subr.bf16.mxu0 0
          %436 = vmatpush1.bf16.msra.mxu0 0
          %437 = vmatprep.subr.bf16.mxu0 0
          %438 = vmatpush1.bf16.msra.mxu0 0
          %439 = vmatprep.subr.bf16.mxu0 0
          %440 = vmatpush1.bf16.msra.mxu0 0
          %441 = vmatprep.subr.bf16.mxu0 0
          %442 = vmatpush1.bf16.msra.mxu0 0
          %443 = vmatprep.subr.bf16.mxu0 0
          %444 = vmatpush1.bf16.msra.mxu0 0
          %445 = vmatprep.subr.bf16.mxu0 0
          %446 = vmatpush1.bf16.msra.mxu0 0
          %447 = vmatprep.subr.bf16.mxu0 0
          %448 = vmatpush1.bf16.msra.mxu0 0
          %449 = vmatprep.subr.bf16.mxu0 0
          %450 = vmatpush1.bf16.msra.mxu0 0
          %451 = vmatprep.subr.bf16.mxu0 0
          %452 = vmatpush1.bf16.msra.mxu0 0
          %453 = vmatprep.subr.bf16.mxu0 0
          %454 = vmatpush1.bf16.msra.mxu0 0
          %455 = vmatprep.subr.bf16.mxu0 0
          %456 = vmatpush1.bf16.msra.mxu0 0
          %457 = vmatprep.subr.bf16.mxu0 0
          %458 = vmatpush1.bf16.msra.mxu0 0
          %459 = vmatprep.subr.bf16.mxu0 0
          %460 = vmatpush1.bf16.msra.mxu0 0
          %461 = vmatprep.mubr.bf16.mxu0 0
          %462 = vmatmul.mubr.bf16.gmra.mrb[0].mxu0 %v423
          %v463 = vpop.f32.mrb[0].mxu0
          %v464 = vadd.f32 0.0, %v463
          %v465 = vpop.f32.mrb[0].mxu0
          %v466 = vpop.f32.mrb[0].mxu0
          %v467 = vadd.f32 0.0, %v466
          %v468 = vpop.f32.mrb[0].mxu0
          %469 = vdwg.mxu0
          %470 = vst [vmem:[#allocation2] sm:$0xff] %v464
          %471 = vst [vmem:[#allocation2 + $0x8] sm:$0xff] %v467
        $region56: #{tpu_custom_call.1} parent=43 // pred_fallthru
          _
        %v472 = vld [vmem:[%s336] sm:$0xff]
        %v473 = vld [vmem:[%s336 + $0x8] sm:$0xff]
        %v474 = vld [vmem:[%s336 + $0x10] sm:$0xff]
        %v475 = vld [vmem:[%s336 + $0x18] sm:$0xff]
        %v476 = vld [vmem:[%s399] sm:$0x1]
        %v478 = vunpack.i.l.s16 %v476
        %v479 = vunpack.i.h.s16 %v476
        %v480 = vand.u32 %v472, 15
        %v481 = vand.u32 %v473, 15
        %v482 = vand.u32 %v474, 15
        %v483 = vand.u32 %v475, 15
        %v484 = vcvt.s32.f32 %v480
        %v485 = vcvt.s32.f32 %v481
        %v486 = vcvt.s32.f32 %v482
        %v487 = vcvt.s32.f32 %v483
        %v488 = vpack.c.bf16 %v485, %v484
        %v489 = vpack.c.bf16 %v487, %v486
        %v490 = vpack.i.b16 %v478, %v478
        %v491 = vpack.i.b16 %v479, %v479
        %v492 = vlaneseq
        %v493 = vshrl.u32 %v492, 7
        %v494 = vsub.s32 0, %v493
        %v495 = vrot.slane %v490, %v494
        %v496 = vlaneseq
        %v497 = vshrl.u32 %v496, 7
        %v498 = vsub.s32 0, %v497
        %v499 = vrot.slane %v491, %v498
        %v501 = vpack.i.b16 %v495, %v495
        %v503 = vlaneseq
        %v504 = vshrl.u32 %v503, 7
        %v505 = vsub.s32 0, %v504
        %v506 = vrot.slane %v501, %v505
        %v508 = vpack.i.b16 %v499, %v499
        %v510 = vlaneseq
        %v511 = vshrl.u32 %v510, 7
        %v512 = vsub.s32 0, %v511
        %v513 = vrot.slane %v508, %v512
        %v514 = vmul.bf16 %v488, %v506
        %v515 = vmul.bf16 %v489, %v513
        %516 = vst [vmem:[#allocation3] sm:$0xff] %v514
        %517 = vst [vmem:[#allocation3 + $0x40] sm:$0xff] %v515
        %v518 = vshra.s32 %v472, 4
        %v519 = vshra.s32 %v473, 4
        %v520 = vshra.s32 %v474, 4
        %v521 = vshra.s32 %v475, 4
        %v522 = vand.u32 %v518, 15
        %v523 = vand.u32 %v519, 15
        %v524 = vand.u32 %v520, 15
        %v525 = vand.u32 %v521, 15
        %v526 = vcvt.s32.f32 %v522
        %v527 = vcvt.s32.f32 %v523
        %v528 = vcvt.s32.f32 %v524
        %v529 = vcvt.s32.f32 %v525
        %v530 = vpack.c.bf16 %v527, %v526
        %v531 = vpack.c.bf16 %v529, %v528
        %v532 = vmul.bf16 %v530, %v506
        %v533 = vmul.bf16 %v531, %v513
        %534 = vst [vmem:[#allocation3 + $0x8] sm:$0xff] %v532
        %535 = vst [vmem:[#allocation3 + $0x48] sm:$0xff] %v533
        %v536 = vshra.s32 %v472, 8
        %v537 = vshra.s32 %v473, 8
        %v538 = vshra.s32 %v474, 8
        %v539 = vshra.s32 %v475, 8
        %v540 = vand.u32 %v536, 15
        %v541 = vand.u32 %v537, 15
        %v542 = vand.u32 %v538, 15
        %v543 = vand.u32 %v539, 15
        %v544 = vcvt.s32.f32 %v540
        %v545 = vcvt.s32.f32 %v541
        %v546 = vcvt.s32.f32 %v542
        %v547 = vcvt.s32.f32 %v543
        %v548 = vpack.c.bf16 %v545, %v544
        %v549 = vpack.c.bf16 %v547, %v546
        %v550 = vmul.bf16 %v548, %v506
        %v551 = vmul.bf16 %v549, %v513
        %552 = vst [vmem:[#allocation3 + $0x10] sm:$0xff] %v550
        %553 = vst [vmem:[#allocation3 + $0x50] sm:$0xff] %v551
        %v554 = vshra.s32 %v472, 12
        %v555 = vshra.s32 %v473, 12
        %v556 = vshra.s32 %v474, 12
        %v557 = vshra.s32 %v475, 12
        %v558 = vand.u32 %v554, 15
        %v559 = vand.u32 %v555, 15
        %v560 = vand.u32 %v556, 15
        %v561 = vand.u32 %v557, 15
        %v562 = vcvt.s32.f32 %v558
        %v563 = vcvt.s32.f32 %v559
        %v564 = vcvt.s32.f32 %v560
        %v565 = vcvt.s32.f32 %v561
        %v566 = vpack.c.bf16 %v563, %v562
        %v567 = vpack.c.bf16 %v565, %v564
        %v568 = vmul.bf16 %v566, %v506
        %v569 = vmul.bf16 %v567, %v513
        %570 = vst [vmem:[#allocation3 + $0x18] sm:$0xff] %v568
        %571 = vst [vmem:[#allocation3 + $0x58] sm:$0xff] %v569
        %v572 = vshra.s32 %v472, 16
        %v573 = vshra.s32 %v473, 16
        %v574 = vshra.s32 %v474, 16
        %v575 = vshra.s32 %v475, 16
        %v576 = vand.u32 %v572, 15
        %v577 = vand.u32 %v573, 15
        %v578 = vand.u32 %v574, 15
        %v579 = vand.u32 %v575, 15
        %v580 = vcvt.s32.f32 %v576
        %v581 = vcvt.s32.f32 %v577
        %v582 = vcvt.s32.f32 %v578
        %v583 = vcvt.s32.f32 %v579
        %v584 = vpack.c.bf16 %v581, %v580
        %v585 = vpack.c.bf16 %v583, %v582
        %v586 = vmul.bf16 %v584, %v506
        %v587 = vmul.bf16 %v585, %v513
        %588 = vst [vmem:[#allocation3 + $0x20] sm:$0xff] %v586
        %589 = vst [vmem:[#allocation3 + $0x60] sm:$0xff] %v587
        %v590 = vshra.s32 %v472, 20
        %v591 = vshra.s32 %v473, 20
        %v592 = vshra.s32 %v474, 20
        %v593 = vshra.s32 %v475, 20
        %v594 = vand.u32 %v590, 15
        %v595 = vand.u32 %v591, 15
        %v596 = vand.u32 %v592, 15
        %v597 = vand.u32 %v593, 15
        %v598 = vcvt.s32.f32 %v594
        %v599 = vcvt.s32.f32 %v595
        %v600 = vcvt.s32.f32 %v596
        %v601 = vcvt.s32.f32 %v597
        %v602 = vpack.c.bf16 %v599, %v598
        %v603 = vpack.c.bf16 %v601, %v600
        %v604 = vmul.bf16 %v602, %v506
        %v605 = vmul.bf16 %v603, %v513
        %606 = vst [vmem:[#allocation3 + $0x28] sm:$0xff] %v604
        %607 = vst [vmem:[#allocation3 + $0x68] sm:$0xff] %v605
        %v608 = vshra.s32 %v472, 24
        %v609 = vshra.s32 %v473, 24
        %v610 = vshra.s32 %v474, 24
        %v611 = vshra.s32 %v475, 24
        %v612 = vand.u32 %v608, 15
        %v613 = vand.u32 %v609, 15
        %v614 = vand.u32 %v610, 15
        %v615 = vand.u32 %v611, 15
        %v616 = vcvt.s32.f32 %v612
        %v617 = vcvt.s32.f32 %v613
        %v618 = vcvt.s32.f32 %v614
        %v619 = vcvt.s32.f32 %v615
        %v620 = vpack.c.bf16 %v617, %v616
        %v621 = vpack.c.bf16 %v619, %v618
        %v622 = vmul.bf16 %v620, %v506
        %v623 = vmul.bf16 %v621, %v513
        %624 = vst [vmem:[#allocation3 + $0x30] sm:$0xff] %v622
        %625 = vst [vmem:[#allocation3 + $0x70] sm:$0xff] %v623
        %v626 = vshra.s32 %v472, 28
        %v627 = vshra.s32 %v473, 28
        %v628 = vshra.s32 %v474, 28
        %v629 = vshra.s32 %v475, 28
        %v630 = vand.u32 %v626, 15
        %v631 = vand.u32 %v627, 15
        %v632 = vand.u32 %v628, 15
        %v633 = vand.u32 %v629, 15
        %v634 = vcvt.s32.f32 %v630
        %v635 = vcvt.s32.f32 %v631
        %v636 = vcvt.s32.f32 %v632
        %v637 = vcvt.s32.f32 %v633
        %v638 = vpack.c.bf16 %v635, %v634
        %v639 = vpack.c.bf16 %v637, %v636
        %v640 = vmul.bf16 %v638, %v506
        %v641 = vmul.bf16 %v639, %v513
        %642 = vst [vmem:[#allocation3 + $0x38] sm:$0xff] %v640
        %643 = vst [vmem:[#allocation3 + $0x78] sm:$0xff] %v641
        %v644 = vld [vmem:[#allocation3] sm:$0xff]
        %v645 = vld [vmem:[#allocation3 + $0x8] sm:$0xff]
        %v646 = vld [vmem:[#allocation3 + $0x10] sm:$0xff]
        %v647 = vld [vmem:[#allocation3 + $0x18] sm:$0xff]
        %v648 = vld [vmem:[#allocation3 + $0x20] sm:$0xff]
        %v649 = vld [vmem:[#allocation3 + $0x28] sm:$0xff]
        %v650 = vld [vmem:[#allocation3 + $0x30] sm:$0xff]
        %v651 = vld [vmem:[#allocation3 + $0x38] sm:$0xff]
        %v652 = vld [vmem:[#allocation3 + $0x40] sm:$0xff]
        %v653 = vld [vmem:[#allocation3 + $0x48] sm:$0xff]
        %v654 = vld [vmem:[#allocation3 + $0x50] sm:$0xff]
        %v655 = vld [vmem:[#allocation3 + $0x58] sm:$0xff]
        %v656 = vld [vmem:[#allocation3 + $0x60] sm:$0xff]
        %v657 = vld [vmem:[#allocation3 + $0x68] sm:$0xff]
        %v658 = vld [vmem:[#allocation3 + $0x70] sm:$0xff]
        %v659 = vld [vmem:[#allocation3 + $0x78] sm:$0xff]
        %v660 = vld [vmem:[#allocation2] sm:$0xff]
        %v661 = vld [vmem:[#allocation2 + $0x8] sm:$0xff]
        %v662 = vld [vmem:[#allocation4] sm:$0xff]
        %v663 = vld [vmem:[#allocation4 + $0x8] sm:$0xff]
        %v666 = vunpack.c.l.b16 %v662
        %v667 = vunpack.c.h.b16 %v662
        %v668 = vunpack.c.l.b16 %v663
        %v669 = vunpack.c.h.b16 %v663
        %v670 = vpack.c.b16 %v668, %v666
        %v671 = vpack.c.b16 %v669, %v667
        %674 = vmatprep.subr.bf16.mxu0 0
        %675 = vmatpush1.bf16.msra.mxu0 %v644
        %676 = vmatprep.subr.bf16.mxu0 0
        %677 = vmatpush1.bf16.msra.mxu0 %v645
        %678 = vmatprep.subr.bf16.mxu0 0
        %679 = vmatpush1.bf16.msra.mxu0 %v646
        %680 = vmatprep.subr.bf16.mxu0 0
        %681 = vmatpush1.bf16.msra.mxu0 %v647
        %682 = vmatprep.subr.bf16.mxu0 0
        %683 = vmatpush1.bf16.msra.mxu0 %v648
        %684 = vmatprep.subr.bf16.mxu0 0
        %685 = vmatpush1.bf16.msra.mxu0 %v649
        %686 = vmatprep.subr.bf16.mxu0 0
        %687 = vmatpush1.bf16.msra.mxu0 %v650
        %688 = vmatprep.subr.bf16.mxu0 0
        %689 = vmatpush1.bf16.msra.mxu0 %v651
        %690 = vmatprep.subr.bf16.mxu0 0
        %691 = vmatpush1.bf16.msra.mxu0 %v652
        %692 = vmatprep.subr.bf16.mxu0 0
        %693 = vmatpush1.bf16.msra.mxu0 %v653
        %694 = vmatprep.subr.bf16.mxu0 0
        %695 = vmatpush1.bf16.msra.mxu0 %v654
        %696 = vmatprep.subr.bf16.mxu0 0
        %697 = vmatpush1.bf16.msra.mxu0 %v655
        %698 = vmatprep.subr.bf16.mxu0 0
        %699 = vmatpush1.bf16.msra.mxu0 %v656
        %700 = vmatprep.subr.bf16.mxu0 0
        %701 = vmatpush1.bf16.msra.mxu0 %v657
        %702 = vmatprep.subr.bf16.mxu0 0
        %703 = vmatpush1.bf16.msra.mxu0 %v658
        %704 = vmatprep.subr.bf16.mxu0 0
        %705 = vmatpush1.bf16.msra.mxu0 %v659
        %706 = vmatprep.mubr.bf16.mxu0 %v671
        %707 = vmatmul.mubr.bf16.gmra.mrb[0].mxu0 %v670
        %v708 = vpop.f32.mrb[0].mxu0
        %v709 = vadd.f32 0.0, %v708
        %v710 = vpop.f32.mrb[0].mxu0
        %v711 = vpop.f32.mrb[0].mxu0
        %v712 = vadd.f32 0.0, %v711
        %v713 = vpop.f32.mrb[0].mxu0
        %714 = vdwg.mxu0
        %v715 = vadd.f32 %v660, %v709
        %v716 = vadd.f32 %v661, %v712
        %717 = vst [vmem:[#allocation2] sm:$0xff] %v715
        %718 = vst [vmem:[#allocation2 + $0x8] sm:$0xff] %v716
        // Predicated region
        $region57: #{tpu_custom_call.1} parent=43 // pred_check
          %p719 = pneg %p409
        $region58: #{tpu_custom_call.1} parent=43 // pred_check_branch
          %721 = sbr.rel (%p719) target = $region60
        $region59: #{tpu_custom_call.1} parent=43 // pred_region
          %v722 = vld [vmem:[#allocation2] sm:$0xff]
          %v723 = vld [vmem:[#allocation2 + $0x8] sm:$0xff]
          %v724 = vld [vmem:[%s406] sm:$0x1]
          %v726 = vlaneseq
          %v727 = vshrl.u32 %v726, 7
          %v728 = vsub.s32 0, %v727
          %v729 = vrot.slane %v724, %v728
          %v731 = vadd.f32 %v722, %v729
          %v732 = vadd.f32 %v723, %v729
          %733 = vst [vmem:[%s383] sm:$0xff] %v731
          %734 = vst [vmem:[%s383 + $0x8] sm:$0xff] %v732
        $region60: #{tpu_custom_call.1} parent=43 // pred_fallthru
          _
        %s735 = sand.u32 %s215, 1
        %s736 = scalar_lea.sflag [#allocation6], %s735
        %s737 = sand.u32 %s215, 1
        %s738 = smul.addr %s737, 16
        %s739 = scalar_lea.vmem [#allocation9], %s738
        // Predicated region
        $region61: #{tpu_custom_call.1} parent=43 // pred_check
          %p740 = pneg %p225
        $region62: #{tpu_custom_call.1} parent=43 // pred_check_branch
          %742 = sbr.rel (%p740) target = $region64
        $region63: #{tpu_custom_call.1} parent=43 // pred_region
          %s743 = smul.u32 2, %s29
          %s745 = ssub.s32 256, 256
          %746 = vsyncadd %s736, %s745
          %s747 = smul.addr %s743, 2
          %s748 = sadd.s32 %s30, %s747
          %s749 = smul.addr %s748, 128
          %s750 = scalar_lea.hbm %s6, %s749
          %s751 = sshll.u32 %s739, 4
          %s752 = int_to_ptr.vmem [resolvable:$true] %s751
          %757 = dma.vmem_to_hbm [thread:$0]  %s752, 256, %s750, %s736, 128, 256, 8
        $region64: #{tpu_custom_call.1} parent=43 // pred_fallthru
          _
      $region44: #{tpu_custom_call.1} parent=5 // pred_fallthru
        _
      %p758 = scmp.le.s32.totalorder 2, %s19
      // Predicated region
      $region65: #{tpu_custom_call.1} parent=5 // pred_check
        %p759 = pneg %p758
      $region66: #{tpu_custom_call.1} parent=5 // pred_check_branch
        %761 = sbr.rel (%p759) target = $region68
      $region67: #{tpu_custom_call.1} parent=5 // pred_region
        %s762 = ssub.s32 %s19, 2
        // Predicated region
        $region69: #{tpu_custom_call.1} parent=67 // pred_check
          %p763 = pneg %p231
        $region70: #{tpu_custom_call.1} parent=67 // pred_check_branch
          %765 = sbr.rel (%p763) target = $region72
        $region71: #{tpu_custom_call.1} parent=67 // pred_region
          %s766 = sand.u32 %s216, 1
          %s767 = scalar_lea.sflag [#allocation6], %s766
          %s768 = sand.u32 %s216, 1
          %s769 = smul.addr %s768, 16
          %s770 = scalar_lea.vmem [#allocation9], %s769
          %771 = dma.done %s767, 256
        $region72: #{tpu_custom_call.1} parent=67 // pred_fallthru
          _
      $region68: #{tpu_custom_call.1} parent=5 // pred_fallthru
        _
    $region6: #{tpu_custom_call.1} parent=1 // loop_footer
      %s23 = sadd.s32 1, %s19
    $region7: #{tpu_custom_call.1} parent=1 // loop_footer_branch
      %18 = sbr.rel target = $region3
    $region8: #{tpu_custom_call.1} parent=1 // loop_exit
      _
    %772 = vsyncpa [#allocation5], 1
    %s773 = scalar_lea.sflag [#allocation5], 1
    %774 = vsyncpa %s773, 1
    %775 = vsyncpa [#allocation8], 1
    %s776 = scalar_lea.sflag [#allocation8], 1
    %777 = vsyncpa %s776, 1
    %778 = vsyncpa [#allocation6], 1
    %s779 = scalar_lea.sflag [#allocation6], 1
    %780 = vsyncpa %s779, 1

</llo_original>
